<compile_context>
chip_gen: v7x
topology: tpu7x:2x2x1
jax: 0.10.0
libtpu: 0.0.40
codegen_flags: <defaults>
</compile_context>

<pallas_src>
import numpy as np
import jax
import jax.numpy as jnp
from jax.experimental import pallas as pl
from jax.experimental.pallas import tpu as pltpu


_LANE = 128  # output channels padded to a multiple of this (lane-dense stores)


def _conv_tanh_pool_kernel(p_ref, w_ref, b_ref, o_ref):
    """One Q-tile of one image.

    p_ref: (1, 4, TQ, K)   stacked im2col patches, one row-group per 2x2
                           pool position (di, dj).
    w_ref: (K, Cpad)       flattened conv weight, Cout zero-padded to Cpad.
    b_ref: (1, Cpad)       f32 bias (zero-padded).
    o_ref: (1, TQ, Cpad)   tanh(max_i(P_i @ W) + b).
    """
    tq = o_ref.shape[1]
    k = w_ref.shape[0]

    # Single fused MXU matmul covering all four pool positions (f32 accumulate).
    p = p_ref[0].reshape(4 * tq, k)                                  # (4*TQ, K)
    z = jnp.dot(p, w_ref[...], preferred_element_type=jnp.float32)  # (4*TQ, Cpad)

    # Elementwise max over the 4 pool positions BEFORE bias + tanh
    # (equivalent: tanh monotone, bias identical across branches).
    z0 = z[0 * tq:1 * tq]
    z1 = z[1 * tq:2 * tq]
    z2 = z[2 * tq:3 * tq]
    z3 = z[3 * tq:4 * tq]
    zmax = jnp.maximum(jnp.maximum(z0, z1), jnp.maximum(z2, z3))

    # Single bias add + single tanh, f32 epilogue, lane-dense (Cpad=128k) store.
    o_ref[0] = jnp.tanh(zmax + b_ref[...]).astype(o_ref.dtype)


def _pick_q_tile(q, k, itemsize, cpad, budget_bytes=16 * 1024 * 1024):
    """Largest Q-tile (multiple of 8 dividing Q, or Q itself) whose per-step
    double-buffered block footprint fits `budget_bytes`.  The 16 MiB budget is
    sized so the same tiling also fits v7x (64 MiB physical / 32 MiB default
    scoped VMEM), not just v5e/v6e."""
    def block_bytes(tq):
        patch = 4 * tq * k * itemsize * 2    # patch input block, double-buffered
        outb = tq * cpad * 4 * 2             # f32 output block, double-buffered
        return patch + outb

    if block_bytes(q) <= budget_bytes or q % 8 != 0:
        return q
    best = q
    t = 8
    while t < q:
        if q % t == 0 and block_bytes(t) <= budget_bytes:
            best = t                         # keep the largest divisor that fits
        t += 8
    return best


def conv_block_forward(x, weight, bias, *, compute_dtype=jnp.float32,
                       nchw_output=True):
    """Conv_Blocks forward: Conv2d(3x3, s=1, p=1) -> tanh -> MaxPool2d(2, 2).

    x: (N, Cin, H, W) NCHW, weight: (Cout, Cin, 3, 3) OIHW, bias: (Cout,).
    Returns (N, Cout, H//2, W//2) NCHW (or NHWC if nchw_output=False).
    """
    N, Cin, H, W = x.shape
    Cout = weight.shape[0]
    assert H % 2 == 0 and W % 2 == 0
    Hp, Wp = H // 2, W // 2
    K = Cin * 9
    Q = Hp * Wp
    cpad = ((Cout + _LANE - 1) // _LANE) * _LANE

    # --- im2col + pool-position stacking, built with a single transpose -----
    # taps[n, c, kh*3+kw, i, j] = x_pad[n, c, i+kh, j+kw]
    xp = jnp.pad(x, ((0, 0), (0, 0), (1, 1), (1, 1)))
    taps = jnp.stack(
        [xp[:, :, kh:kh + H, kw:kw + W] for kh in range(3) for kw in range(3)],
        axis=2)                                        # (N, Cin, 9, H, W)
    taps = taps.reshape(N, K, Hp, 2, Wp, 2)            # (N, K, ip, di, jp, dj)
    p = jnp.transpose(taps, (0, 3, 5, 2, 4, 1))        # (N, di, dj, ip, jp, K)
    p = p.reshape(N, 4, Q, K).astype(compute_dtype)    # (N, 4, Q, K)

    # --- parameters: flatten to (K, Cout), zero-pad Cout -> cpad -------------
    # PyTorch weight flatten order (Cin, kh, kw) matches the K ordering above.
    w_mat = weight.reshape(Cout, K).T.astype(compute_dtype)        # (K, Cout)
    w_mat = jnp.pad(w_mat, ((0, 0), (0, cpad - Cout)))
    b_mat = jnp.pad(bias.reshape(1, Cout).astype(jnp.float32),
                    ((0, 0), (0, cpad - Cout)))

    # --- Pallas kernel: fused matmul + maxpool + bias + tanh -----------------
    tq = _pick_q_tile(Q, K, jnp.dtype(compute_dtype).itemsize, cpad)
    grid = (N, Q // tq)

    out = pl.pallas_call(
        _conv_tanh_pool_kernel,
        out_shape=jax.ShapeDtypeStruct((N, Q, cpad), jnp.float32),
        grid=grid,
        in_specs=[
            pl.BlockSpec((1, 4, tq, K), lambda n, t: (n, 0, t, 0)),
            pl.BlockSpec((K, cpad), lambda n, t: (0, 0)),   # resident weights
            pl.BlockSpec((1, cpad), lambda n, t: (0, 0)),   # resident bias
        ],
        out_specs=pl.BlockSpec((1, tq, cpad), lambda n, t: (n, t, 0)),
        compiler_params=pltpu.CompilerParams(
            dimension_semantics=("parallel", "parallel")),
    )(p, w_mat, b_mat)

    out = out[:, :, :Cout].reshape(N, Hp, Wp, Cout)
    if nchw_output:
        out = jnp.transpose(out, (0, 3, 1, 2))          # -> NCHW (module layout)
    return out.astype(x.dtype)


def _reference(x, weight, bias):
    y = jax.lax.conv_general_dilated(
        x, weight, window_strides=(1, 1), padding=((1, 1), (1, 1)),
        dimension_numbers=("NCHW", "OIHW", "NCHW"))
    y = jnp.tanh(y + bias[None, :, None, None])
    y = jax.lax.reduce_window(
        y, -jnp.inf, jax.lax.max,
        window_dimensions=(1, 1, 2, 2), window_strides=(1, 1, 2, 2),
        padding="VALID")
    return y


if __name__ == "__main__":
    key = jax.random.PRNGKey(0)
    kx, kw, kb = jax.random.split(key, 3)

    N, Cin, Cout, H, W = 2, 4, 8, 16, 16
    x = jax.random.normal(kx, (N, Cin, H, W), dtype=jnp.float32)

    # Deterministic synthetic parameters (shapes from nn.Conv2d(Cin, Cout, 3, 1, 1)).
    fan_in = Cin * 3 * 3
    bound = 1.0 / np.sqrt(fan_in)
    weight = jax.random.uniform(kw, (Cout, Cin, 3, 3), jnp.float32, -bound, bound)
    bias = jax.random.uniform(kb, (Cout,), jnp.float32, -bound, bound)

    ref = jax.block_until_ready(_reference(x, weight, bias))

    # f32 operands: exact match with the reference.
    out_f32 = jax.block_until_ready(
        conv_block_forward(x, weight, bias, compute_dtype=jnp.float32))
    assert out_f32.shape == (N, Cout, H // 2, W // 2)
    np.testing.assert_allclose(np.asarray(out_f32), np.asarray(ref),
                               rtol=1e-5, atol=1e-5)

    # bf16 operands (f32 accumulate + f32 epilogue): half the HBM traffic,
    # 2x MXU throughput; looser tolerance only from the bf16 operand cast.
    out_bf16 = jax.block_until_ready(
        conv_block_forward(x, weight, bias, compute_dtype=jnp.bfloat16))
    np.testing.assert_allclose(np.asarray(out_bf16), np.asarray(ref),
                               rtol=3e-2, atol=3e-2)

    print("KERNEL_OK")
</pallas_src>

<mosaic_0001>
module attributes {stable_mosaic.version = 11 : i64} {
  func.func @_conv_tanh_pool_kernel(%arg0: i32, %arg1: i32, %arg2: memref<1x4x64x36xf32, #tpu.memory_space<vmem>>, %arg3: memref<36x128xf32, #tpu.memory_space<vmem>>, %arg4: memref<1x128xf32, #tpu.memory_space<vmem>>, %arg5: memref<1x64x128xf32, #tpu.memory_space<vmem>>) attributes {dimension_semantics = [#tpu.dimension_semantics<parallel>, #tpu.dimension_semantics<parallel>], iteration_bounds = array<i64: 2, 1>, scalar_prefetch = 0 : i64, scratch_operands = 0 : i64, tpu.core_type = #tpu.core_type<tc>, window_params = [{transform_indices = @transform_0, window_bounds = array<i64: 1, 4, 64, 36>}, {pipeline_mode = #tpu.pipeline_mode<synchronous>, transform_indices = @transform_1, window_bounds = array<i64: 36, 128>}, {pipeline_mode = #tpu.pipeline_mode<synchronous>, transform_indices = @transform_2, window_bounds = array<i64: 1, 128>}, {transform_indices = @transform_3, window_bounds = array<i64: 1, 64, 128>}]} {
    %c0 = arith.constant 0 : index
    %c0_0 = arith.constant 0 : index
    %c0_1 = arith.constant 0 : index
    %c0_2 = arith.constant 0 : index
    %0 = vector.load %arg2[%c0, %c0_0, %c0_1, %c0_2] : memref<1x4x64x36xf32, #tpu.memory_space<vmem>>, vector<1x4x64x36xf32>
    %1 = vector.shape_cast %0 : vector<1x4x64x36xf32> to vector<4x64x36xf32>
    %2 = vector.shape_cast %1 : vector<4x64x36xf32> to vector<256x36xf32>
    %c0_3 = arith.constant 0 : index
    %c0_4 = arith.constant 0 : index
    %3 = vector.load %arg3[%c0_3, %c0_4] : memref<36x128xf32, #tpu.memory_space<vmem>>, vector<36x128xf32>
    %cst = arith.constant dense<0.000000e+00> : vector<256x128xf32>
    %4 = tpu.matmul %2, %3, %cst {dimension_numbers = #tpu.dot_dimension_numbers<[1], [0], [0], [1], [0, 0, 1, 1], [], []>} : vector<256x36xf32>, vector<36x128xf32>, vector<256x128xf32> -> vector<256x128xf32>
    %5 = vector.extract_strided_slice %4 {offsets = [0, 0], sizes = [64, 128], strides = [1, 1]} : vector<256x128xf32> to vector<64x128xf32>
    %6 = vector.extract_strided_slice %4 {offsets = [64, 0], sizes = [64, 128], strides = [1, 1]} : vector<256x128xf32> to vector<64x128xf32>
    %7 = vector.extract_strided_slice %4 {offsets = [128, 0], sizes = [64, 128], strides = [1, 1]} : vector<256x128xf32> to vector<64x128xf32>
    %8 = vector.extract_strided_slice %4 {offsets = [192, 0], sizes = [64, 128], strides = [1, 1]} : vector<256x128xf32> to vector<64x128xf32>
    %9 = arith.maximumf %5, %6 : vector<64x128xf32>
    %10 = arith.maximumf %7, %8 : vector<64x128xf32>
    %11 = arith.maximumf %9, %10 : vector<64x128xf32>
    %c0_5 = arith.constant 0 : index
    %c0_6 = arith.constant 0 : index
    %12 = vector.load %arg4[%c0_5, %c0_6] : memref<1x128xf32, #tpu.memory_space<vmem>>, vector<1x128xf32>
    %13 = vector.broadcast %12 : vector<1x128xf32> to vector<64x128xf32>
    %14 = arith.addf %11, %13 : vector<64x128xf32>
    %15 = math.tanh %14 : vector<64x128xf32>
    %c0_7 = arith.constant 0 : index
    %c0_8 = arith.constant 0 : index
    %c0_9 = arith.constant 0 : index
    %16 = vector.load %arg5[%c0_7, %c0_8, %c0_9] : memref<1x64x128xf32, #tpu.memory_space<vmem>>, vector<1x64x128xf32>
    %17 = vector.shape_cast %16 : vector<1x64x128xf32> to vector<64x128xf32>
    %18 = vector.shape_cast %15 : vector<64x128xf32> to vector<1x64x128xf32>
    tpu.vector_store %arg5[%c0_7, %c0_8, %c0_9], %18 {strides = array<i32>} : memref<1x64x128xf32, #tpu.memory_space<vmem>>, vector<1x64x128xf32>,
    return
  }
  func.func @transform_0(%arg0: i32, %arg1: i32) -> (i32, i32, i32, i32) {
    %c0_i32 = arith.constant 0 : i32
    %c0_i32_0 = arith.constant 0 : i32
    %c0_i32_1 = arith.constant 0 : i32
    return %arg0, %c0_i32, %arg1, %c0_i32_0 : i32, i32, i32, i32
  }
  func.func @transform_1(%arg0: i32, %arg1: i32) -> (i32, i32) {
    %c0_i32 = arith.constant 0 : i32
    %c0_i32_0 = arith.constant 0 : i32
    %c0_i32_1 = arith.constant 0 : i32
    return %c0_i32, %c0_i32_0 : i32, i32
  }
  func.func @transform_2(%arg0: i32, %arg1: i32) -> (i32, i32) {
    %c0_i32 = arith.constant 0 : i32
    %c0_i32_0 = arith.constant 0 : i32
    %c0_i32_1 = arith.constant 0 : i32
    return %c0_i32, %c0_i32_0 : i32, i32
  }
  func.func @transform_3(%arg0: i32, %arg1: i32) -> (i32, i32, i32) {
    %c0_i32 = arith.constant 0 : i32
    %c0_i32_0 = arith.constant 0 : i32
    return %arg0, %arg1, %c0_i32 : i32, i32, i32
  }
}

</mosaic_0001>

<llo_original>
// kernel: tpu_custom_call.1
$region0: #{tpu_custom_call.1}
  #allocation0 [shape = 'u32[]', space=smem, size = 0x4, offset = 0x4, fixed_abs, tag = 'smem constant byte address 0x4 - core index']
  #allocation1 [shape = 'u32[144,128]{1,0:T(1,128)}', space=vmem, size = 0x12000, scoped, tag = 'internal scratch']
  %s0 = inlined_call_operand.vmem [shape: f32[2,4,64,36], index: 0, kind: input, shape index: {}]
  %s1 = inlined_call_operand.vmem [shape: f32[36,128], index: 1, kind: input, shape index: {}]
  %s2 = inlined_call_operand.vmem [shape: f32[1,128], index: 2, kind: input, shape index: {}]
  %s3 = inlined_call_operand.hbm [shape: f32[2,64,128], index: 3, kind: output, shape index: {}]
  %s4 = sld [smem:[#allocation0]]
  $region45: #{tpu_custom_call.1} parent=0
    _
  %s6 = ssub.s32 1, %s4
  %s7 = scalar_select 0, %s6, %s4
  $region1: #{tpu_custom_call.1} parent=0
    #allocation2 [shape = 'u8[65536]{0}', space=vmem, size = 0x10000, scoped, tag = 'output window, operand 0']
    #allocation3 [shape = 's32[2]{0}', space=sflag, size = 0x8, scoped, tag = 'scoped memory for tpu_custom_call.1']
    %8 = vsyncpa [#allocation3], 0
    %s9 = scalar_lea.sflag [#allocation3], 1
    %10 = vsyncpa %s9, 0
    loop: start=0, step=1, limit=4
    $region2: #{tpu_custom_call.1} parent=1 // loop_pre_header
      _
    $region3: #{tpu_custom_call.1} parent=1 // loop_header
      %s12 = sphi 0, %s16
      %p13 = scmp.ge.s32.totalorder %s12, 4
      %s19 = sphi 0, %s31
      %s20 = sphi 0, %s27
      %s21 = sphi 0, %s19
      %s22 = sphi 0, %s20
      %s23 = sphi 0, %s21
      %s24 = sphi 0, %s22
      %s36 = sphi 0, %s38
      %s39 = sphi 0, %s36
      %s40 = sphi 0, %s39
      %s56 = sphi 0, %s40
      %s60 = sphi 0, %s60
      %s62 = sphi 0, %s60
      %s63 = sphi 0, %s62
      %s77 = sphi 0, %s63
      %s81 = sphi 0, %s81
      %s83 = sphi 0, %s81
      %s84 = sphi 0, %s83
      %s98 = sphi 0, %s84
      %s106 = sphi 0, %s108
      %s109 = sphi 0, %s106
      %s110 = sphi 0, %s109
      %s126 = sphi 0, %s110
    $region4: #{tpu_custom_call.1} parent=1 // loop_header_branch
      %15 = sbr.rel (%p13) target = $region8
    $region5: #{tpu_custom_call.1} parent=1 // loop_body
      %s17 = ssub.s32 %s12, 1
      %s18 = ssub.s32 %s12, 2
      %s25 = sadd.s32 1, %s20
      %p26 = scmp.ge.s32.totalorder %s25, 1
      %s27 = scalar_select %p26, 0, %s25
      %s28 = sadd.s32 1, %s19
      %s29 = scalar_select %p26, %s28, %s19
      %p30 = scmp.ge.s32.totalorder %s29, 2
      %s31 = scalar_select %p30, 0, %s29
      %s32 = ssub.s32 %s19, %s31
      %s33 = ssub.s32 %s20, %s27
      %s34 = sor.u32 %s32, %s33
      %p35 = scmp.eq.s32.totalorder %s34, 0
      %s37 = sadd.s32 %s36, 1
      %s38 = scalar_select %p35, %s36, %s37
      %p41 = pneg %p35
      %p42 = scmp.eq.s32.totalorder %s12, 1
      %p43 = por %p41, %p42
      %p44 = scmp.ne.s32.totalorder %s36, %s39
      %p45 = scmp.eq.s32.totalorder %s12, 0
      %p46 = por %p44, %p45
      %p47 = scmp.ne.s32.totalorder %s36, %s39
      %p48 = scmp.eq.s32.totalorder %s17, 1
      %p49 = por %p47, %p48
      %p50 = scmp.ne.s32.totalorder %s39, %s40
      %p51 = scmp.eq.s32.totalorder %s17, 0
      %p52 = por %p50, %p51
      %p53 = scmp.ne.s32.totalorder %s39, %s40
      %p54 = scmp.eq.s32.totalorder %s18, 1
      %p55 = por %p53, %p54
      %p57 = scmp.ne.s32.totalorder %s40, %s56
      %p58 = scmp.eq.s32.totalorder %s18, 0
      %p59 = por %p57, %p58
      %s61 = sadd.s32 %s60, 1
      %p64 = scmp.eq.s32.totalorder %s12, 1
      %p65 = scmp.ne.s32.totalorder %s60, %s62
      %p66 = scmp.eq.s32.totalorder %s12, 0
      %p67 = por %p65, %p66
      %p68 = scmp.ne.s32.totalorder %s60, %s62
      %p69 = scmp.eq.s32.totalorder %s17, 1
      %p70 = por %p68, %p69
      %p71 = scmp.ne.s32.totalorder %s62, %s63
      %p72 = scmp.eq.s32.totalorder %s17, 0
      %p73 = por %p71, %p72
      %p74 = scmp.ne.s32.totalorder %s62, %s63
      %p75 = scmp.eq.s32.totalorder %s18, 1
      %p76 = por %p74, %p75
      %p78 = scmp.ne.s32.totalorder %s63, %s77
      %p79 = scmp.eq.s32.totalorder %s18, 0
      %p80 = por %p78, %p79
      %s82 = sadd.s32 %s81, 1
      %p85 = scmp.eq.s32.totalorder %s12, 1
      %p86 = scmp.ne.s32.totalorder %s81, %s83
      %p87 = scmp.eq.s32.totalorder %s12, 0
      %p88 = por %p86, %p87
      %p89 = scmp.ne.s32.totalorder %s81, %s83
      %p90 = scmp.eq.s32.totalorder %s17, 1
      %p91 = por %p89, %p90
      %p92 = scmp.ne.s32.totalorder %s83, %s84
      %p93 = scmp.eq.s32.totalorder %s17, 0
      %p94 = por %p92, %p93
      %p95 = scmp.ne.s32.totalorder %s83, %s84
      %p96 = scmp.eq.s32.totalorder %s18, 1
      %p97 = por %p95, %p96
      %p99 = scmp.ne.s32.totalorder %s84, %s98
      %p100 = scmp.eq.s32.totalorder %s18, 0
      %p101 = por %p99, %p100
      %s102 = ssub.s32 %s19, %s31
      %s103 = ssub.s32 %s20, %s27
      %s104 = sor.u32 %s102, %s103
      %p105 = scmp.eq.s32.totalorder %s104, 0
      %s107 = sadd.s32 %s106, 1
      %s108 = scalar_select %p105, %s106, %s107
      %p111 = pneg %p105
      %p112 = scmp.eq.s32.totalorder %s12, 1
      %p113 = por %p111, %p112
      %p114 = scmp.ne.s32.totalorder %s106, %s109
      %p115 = scmp.eq.s32.totalorder %s12, 0
      %p116 = por %p114, %p115
      %p117 = scmp.ne.s32.totalorder %s106, %s109
      %p118 = scmp.eq.s32.totalorder %s17, 1
      %p119 = por %p117, %p118
      %p120 = scmp.ne.s32.totalorder %s109, %s110
      %p121 = scmp.eq.s32.totalorder %s17, 0
      %p122 = por %p120, %p121
      %p123 = scmp.ne.s32.totalorder %s109, %s110
      %p124 = scmp.eq.s32.totalorder %s18, 1
      %p125 = por %p123, %p124
      %p127 = scmp.ne.s32.totalorder %s110, %s126
      %p128 = scmp.eq.s32.totalorder %s18, 0
      %p129 = por %p127, %p128
      %p130 = scmp.le.s32.totalorder 1, %s12
      %p131 = scmp.lt.s32.totalorder %s12, 3
      %p132 = pnand %p130, %p131
      %p133 = pneg %p132
      // Predicated region
      $region9: #{tpu_custom_call.1} parent=5 // pred_check
        _
      $region10: #{tpu_custom_call.1} parent=5 // pred_check_branch
        %135 = sbr.rel (%p132) target = $region12
      $region11: #{tpu_custom_call.1} parent=5 // pred_region
        %s136 = ssub.s32 %s12, 1
        // Predicated region
        $region13: #{tpu_custom_call.1} parent=11 // pred_check
          %p137 = pneg %p73
        $region14: #{tpu_custom_call.1} parent=11 // pred_check_branch
          %139 = sbr.rel (%p137) target = $region16
        $region15: #{tpu_custom_call.1} parent=11 // pred_region
          _
        $region16: #{tpu_custom_call.1} parent=11 // pred_fallthru
          _
        // Predicated region
        $region17: #{tpu_custom_call.1} parent=11 // pred_check
          %p140 = pneg %p94
        $region18: #{tpu_custom_call.1} parent=11 // pred_check_branch
          %142 = sbr.rel (%p140) target = $region20
        $region19: #{tpu_custom_call.1} parent=11 // pred_region
          _
        $region20: #{tpu_custom_call.1} parent=11 // pred_fallthru
          _
      $region12: #{tpu_custom_call.1} parent=5 // pred_fallthru
        _
      %p143 = scmp.lt.s32.totalorder %s12, 2
      // Predicated region
      $region21: #{tpu_custom_call.1} parent=5 // pred_check
        %p144 = pneg %p143
      $region22: #{tpu_custom_call.1} parent=5 // pred_check_branch
        %146 = sbr.rel (%p144) target = $region24
      $region23: #{tpu_custom_call.1} parent=5 // pred_region
        // Predicated region
        $region25: #{tpu_custom_call.1} parent=23 // pred_check
          %p147 = pneg %p46
        $region26: #{tpu_custom_call.1} parent=23 // pred_check_branch
          %149 = sbr.rel (%p147) target = $region28
        $region27: #{tpu_custom_call.1} parent=23 // pred_region
          %s150 = smul.u32 8, %s20
          %p151 = scmp.lt.s32.totalorder %s19, 1
          %s152 = scalar_select %p151, %s19, 1
          %p153 = scmp.lt.s32.totalorder %s150, 7
          %s154 = scalar_select %p153, %s150, 7
          %s155 = smul.addr %s152, 32
          %s156 = sadd.s32 %s154, %s155
          %s157 = smul.addr %s156, 8
          %s158 = scalar_lea.vmem %s0, %s157
          %s159 = smul.u32 8, %s20
        $region28: #{tpu_custom_call.1} parent=23 // pred_fallthru
          _
      $region24: #{tpu_custom_call.1} parent=5 // pred_fallthru
        _
      %p160 = scmp.le.s32.totalorder 1, %s12
      %p161 = scmp.lt.s32.totalorder %s12, 3
      %p162 = pnand %p160, %p161
      %p163 = pneg %p162
      // Predicated region
      $region29: #{tpu_custom_call.1} parent=5 // pred_check
        _
      $region30: #{tpu_custom_call.1} parent=5 // pred_check_branch
        %165 = sbr.rel (%p162) target = $region32
      $region31: #{tpu_custom_call.1} parent=5 // pred_region
        %s166 = ssub.s32 %s12, 1
        %s167 = smul.u32 8, %s22
        %p168 = scmp.lt.s32.totalorder %s21, 1
        %s169 = scalar_select %p168, %s21, 1
        %p170 = scmp.lt.s32.totalorder %s167, 7
        %s171 = scalar_select %p170, %s167, 7
        %s172 = smul.addr %s169, 32
        %s173 = sadd.s32 %s171, %s172
        %s174 = smul.addr %s173, 8
        %s175 = scalar_lea.vmem %s0, %s174
        %p176 = pneg %p52
        %p177 = pneg %p49
        %p178 = pneg %p73
        %p179 = pneg %p70
        %p180 = pneg %p94
        %p181 = pneg %p91
        %p182 = pneg %p122
        %p183 = pneg %p119
        %s184 = sand.u32 %s109, 1
        %s185 = scalar_lea.sflag [#allocation3], %s184
        %s186 = sand.u32 %s109, 1
        %s187 = smul.addr %s186, 64
        %s188 = scalar_lea.vmem [#allocation2], %s187
        %s189 = smul.u32 8, %s22
        %p190 = scmp.lt.s32.totalorder %s21, 1
        %s191 = scalar_select %p190, %s21, 1
        %p192 = scmp.lt.s32.totalorder %s189, 7
        %s193 = scalar_select %p192, %s189, 7
        %s194 = smul.addr %s191, 32
        %s195 = sadd.s32 %s193, %s194
        %s196 = smul.addr %s195, 8
        %s197 = scalar_lea.vmem %s0, %s196
        %s198 = smul.u32 8, %s22
        %s199 = smul.u32 8, %s22
        %v200 = vld [vmem:[%s197] sm:$0xff]
        %v201 = vld [vmem:[%s197 + $0x8] sm:$0xff]
        %v202 = vld [vmem:[%s197 + $0x10] sm:$0xff]
        %v203 = vld [vmem:[%s197 + $0x18] sm:$0xff]
        %v204 = vld [vmem:[%s197 + $0x20] sm:$0xff]
        %v205 = vld [vmem:[%s197 + $0x28] sm:$0xff]
        %v206 = vld [vmem:[%s197 + $0x30] sm:$0xff]
        %v207 = vld [vmem:[%s197 + $0x38] sm:$0xff]
        %v208 = vld [vmem:[%s197 + $0x40] sm:$0xff]
        %v209 = vld [vmem:[%s197 + $0x48] sm:$0xff]
        %v210 = vld [vmem:[%s197 + $0x50] sm:$0xff]
        %v211 = vld [vmem:[%s197 + $0x58] sm:$0xff]
        %v212 = vld [vmem:[%s197 + $0x60] sm:$0xff]
        %v213 = vld [vmem:[%s197 + $0x68] sm:$0xff]
        %v214 = vld [vmem:[%s197 + $0x70] sm:$0xff]
        %v215 = vld [vmem:[%s197 + $0x78] sm:$0xff]
        %v216 = vld [vmem:[%s197 + $0x80] sm:$0xff]
        %v217 = vld [vmem:[%s197 + $0x88] sm:$0xff]
        %v218 = vld [vmem:[%s197 + $0x90] sm:$0xff]
        %v219 = vld [vmem:[%s197 + $0x98] sm:$0xff]
        %v220 = vld [vmem:[%s197 + $0xa0] sm:$0xff]
        %v221 = vld [vmem:[%s197 + $0xa8] sm:$0xff]
        %v222 = vld [vmem:[%s197 + $0xb0] sm:$0xff]
        %v223 = vld [vmem:[%s197 + $0xb8] sm:$0xff]
        %v224 = vld [vmem:[%s197 + $0xc0] sm:$0xff]
        %v225 = vld [vmem:[%s197 + $0xc8] sm:$0xff]
        %v226 = vld [vmem:[%s197 + $0xd0] sm:$0xff]
        %v227 = vld [vmem:[%s197 + $0xd8] sm:$0xff]
        %v228 = vld [vmem:[%s197 + $0xe0] sm:$0xff]
        %v229 = vld [vmem:[%s197 + $0xe8] sm:$0xff]
        %v230 = vld [vmem:[%s197 + $0xf0] sm:$0xff]
        %v231 = vld [vmem:[%s197 + $0xf8] sm:$0xff]
        %v232 = vld [vmem:[%s1] sm:$0xff]
        %v233 = vld [vmem:[%s1 + $0x8] sm:$0xff]
        %v234 = vld [vmem:[%s1 + $0x10] sm:$0xff]
        %v235 = vld [vmem:[%s1 + $0x18] sm:$0xff]
        %v236 = vld [vmem:[%s1 + $0x20] sm:$0xf]
        %vm237 = vcmask 293888
        %v239 = vsel %vm237, %v200, 0
        %v242 = vsel %vm237, %v201, 0
        %v245 = vsel %vm237, %v202, 0
        %v248 = vsel %vm237, %v203, 0
        %v251 = vsel %vm237, %v204, 0
        %v254 = vsel %vm237, %v205, 0
        %v257 = vsel %vm237, %v206, 0
        %v260 = vsel %vm237, %v207, 0
        %v263 = vsel %vm237, %v208, 0
        %v266 = vsel %vm237, %v209, 0
        %v269 = vsel %vm237, %v210, 0
        %v272 = vsel %vm237, %v211, 0
        %v275 = vsel %vm237, %v212, 0
        %v278 = vsel %vm237, %v213, 0
        %v281 = vsel %vm237, %v214, 0
        %v284 = vsel %vm237, %v215, 0
        %v287 = vsel %vm237, %v216, 0
        %v290 = vsel %vm237, %v217, 0
        %v293 = vsel %vm237, %v218, 0
        %v296 = vsel %vm237, %v219, 0
        %v299 = vsel %vm237, %v220, 0
        %v302 = vsel %vm237, %v221, 0
        %v305 = vsel %vm237, %v222, 0
        %v308 = vsel %vm237, %v223, 0
        %v311 = vsel %vm237, %v224, 0
        %v314 = vsel %vm237, %v225, 0
        %v317 = vsel %vm237, %v226, 0
        %v320 = vsel %vm237, %v227, 0
        %v323 = vsel %vm237, %v228, 0
        %v326 = vsel %vm237, %v229, 0
        %v329 = vsel %vm237, %v230, 0
        %v332 = vsel %vm237, %v231, 0
        %vm334 = vcmask 1043456
        %v336 = vsel %vm334, %v236, 0
        %338 = vmatprep.subr.mxu0 0.0
        %339 = vmatpush1.msra.mxu0 %v232
        %340 = vmatprep.subr.mxu0 0.0
        %341 = vmatpush1.msra.mxu0 %v233
        %342 = vmatprep.subr.mxu0 0.0
        %343 = vmatpush1.msra.mxu0 %v234
        %344 = vmatprep.subr.mxu0 0.0
        %345 = vmatpush1.msra.mxu0 %v235
        %346 = vmatprep.subr.mxu0 0.0
        %347 = vmatpush1.msra.mxu0 %v336
        %348 = vmatprep.subr.mxu0 0.0
        %349 = vmatpush1.msra.mxu0 0.0
        %350 = vmatprep.subr.mxu0 0.0
        %351 = vmatpush1.msra.mxu0 0.0
        %352 = vmatprep.subr.mxu0 0.0
        %353 = vmatpush1.msra.mxu0 0.0
        %354 = vmatprep.subr.mxu0 0.0
        %355 = vmatpush1.msra.mxu0 0.0
        %356 = vmatprep.subr.mxu0 0.0
        %357 = vmatpush1.msra.mxu0 0.0
        %358 = vmatprep.subr.mxu0 0.0
        %359 = vmatpush1.msra.mxu0 0.0
        %360 = vmatprep.subr.mxu0 0.0
        %361 = vmatpush1.msra.mxu0 0.0
        %362 = vmatprep.subr.mxu0 0.0
        %363 = vmatpush1.msra.mxu0 0.0
        %364 = vmatprep.subr.mxu0 0.0
        %365 = vmatpush1.msra.mxu0 0.0
        %366 = vmatprep.subr.mxu0 0.0
        %367 = vmatpush1.msra.mxu0 0.0
        %368 = vmatprep.subr.mxu0 0.0
        %369 = vmatpush1.msra.mxu0 0.0
        %370 = vmatprep.subr.mxu0 0.0
        %371 = vmatpush1.msra.mxu0 0.0
        %372 = vmatprep.subr.mxu0 0.0
        %373 = vmatpush1.msra.mxu0 0.0
        %374 = vmatprep.subr.mxu0 0.0
        %375 = vmatpush1.msra.mxu0 0.0
        %376 = vmatprep.subr.mxu0 0.0
        %377 = vmatpush1.msra.mxu0 0.0
        %378 = vmatprep.subr.mxu0 0.0
        %379 = vmatpush1.msra.mxu0 0.0
        %380 = vmatprep.subr.mxu0 0.0
        %381 = vmatpush1.msra.mxu0 0.0
        %382 = vmatprep.subr.mxu0 0.0
        %383 = vmatpush1.msra.mxu0 0.0
        %384 = vmatprep.subr.mxu0 0.0
        %385 = vmatpush1.msra.mxu0 0.0
        %386 = vmatprep.subr.mxu0 0.0
        %387 = vmatpush1.msra.mxu0 0.0
        %388 = vmatprep.subr.mxu0 0.0
        %389 = vmatpush1.msra.mxu0 0.0
        %390 = vmatprep.subr.mxu0 0.0
        %391 = vmatpush1.msra.mxu0 0.0
        %392 = vmatprep.subr.mxu0 0.0
        %393 = vmatpush1.msra.mxu0 0.0
        %394 = vmatprep.subr.mxu0 0.0
        %395 = vmatpush1.msra.mxu0 0.0
        %396 = vmatprep.subr.mxu0 0.0
        %397 = vmatpush1.msra.mxu0 0.0
        %398 = vmatprep.subr.mxu0 0.0
        %399 = vmatpush1.msra.mxu0 0.0
        %400 = vmatprep.subr.mxu0 0.0
        %401 = vmatpush1.msra.mxu0 0.0
        %402 = vmatprep.mubr.f32.mxu0 0.0
        %403 = vmatmul.mubr.f32.gmra.mrb[0].mxu0 %v239
        %v404 = vpop.f32.mrb[0].mxu0
        %v405 = vadd.f32 0.0, %v404
        %v406 = vpop.f32.mrb[0].mxu0
        %407 = vmatprep.mubr.f32.mxu0 0.0
        %408 = vmatmul.mubr.f32.gmra.mrb[0].mxu0 %v242
        %v409 = vpop.f32.mrb[0].mxu0
        %v410 = vadd.f32 0.0, %v409
        %v411 = vpop.f32.mrb[0].mxu0
        %412 = vmatprep.mubr.f32.mxu0 0.0
        %413 = vmatmul.mubr.f32.gmra.mrb[0].mxu0 %v245
        %v414 = vpop.f32.mrb[0].mxu0
        %v415 = vadd.f32 0.0, %v414
        %v416 = vpop.f32.mrb[0].mxu0
        %417 = vmatprep.mubr.f32.mxu0 0.0
        %418 = vmatmul.mubr.f32.gmra.mrb[0].mxu0 %v248
        %v419 = vpop.f32.mrb[0].mxu0
        %v420 = vadd.f32 0.0, %v419
        %v421 = vpop.f32.mrb[0].mxu0
        %422 = vmatprep.mubr.f32.mxu0 0.0
        %423 = vmatmul.mubr.f32.gmra.mrb[0].mxu0 %v251
        %v424 = vpop.f32.mrb[0].mxu0
        %v425 = vadd.f32 0.0, %v424
        %v426 = vpop.f32.mrb[0].mxu0
        %427 = vmatprep.mubr.f32.mxu0 0.0
        %428 = vmatmul.mubr.f32.gmra.mrb[0].mxu0 %v254
        %v429 = vpop.f32.mrb[0].mxu0
        %v430 = vadd.f32 0.0, %v429
        %v431 = vpop.f32.mrb[0].mxu0
        %432 = vmatprep.mubr.f32.mxu0 0.0
        %433 = vmatmul.mubr.f32.gmra.mrb[0].mxu0 %v257
        %v434 = vpop.f32.mrb[0].mxu0
        %v435 = vadd.f32 0.0, %v434
        %v436 = vpop.f32.mrb[0].mxu0
        %437 = vmatprep.mubr.f32.mxu0 0.0
        %438 = vmatmul.mubr.f32.gmra.mrb[0].mxu0 %v260
        %v439 = vpop.f32.mrb[0].mxu0
        %v440 = vadd.f32 0.0, %v439
        %v441 = vpop.f32.mrb[0].mxu0
        %442 = vmatprep.mubr.f32.mxu0 0.0
        %443 = vmatmul.mubr.f32.gmra.mrb[0].mxu0 %v263
        %v444 = vpop.f32.mrb[0].mxu0
        %v445 = vadd.f32 0.0, %v444
        %v446 = vpop.f32.mrb[0].mxu0
        %447 = vmatprep.mubr.f32.mxu0 0.0
        %448 = vmatmul.mubr.f32.gmra.mrb[0].mxu0 %v266
        %v449 = vpop.f32.mrb[0].mxu0
        %v450 = vadd.f32 0.0, %v449
        %v451 = vpop.f32.mrb[0].mxu0
        %452 = vmatprep.mubr.f32.mxu0 0.0
        %453 = vmatmul.mubr.f32.gmra.mrb[0].mxu0 %v269
        %v454 = vpop.f32.mrb[0].mxu0
        %v455 = vadd.f32 0.0, %v454
        %v456 = vpop.f32.mrb[0].mxu0
        %457 = vmatprep.mubr.f32.mxu0 0.0
        %458 = vmatmul.mubr.f32.gmra.mrb[0].mxu0 %v272
        %v459 = vpop.f32.mrb[0].mxu0
        %v460 = vadd.f32 0.0, %v459
        %v461 = vpop.f32.mrb[0].mxu0
        %462 = vmatprep.mubr.f32.mxu0 0.0
        %463 = vmatmul.mubr.f32.gmra.mrb[0].mxu0 %v275
        %v464 = vpop.f32.mrb[0].mxu0
        %v465 = vadd.f32 0.0, %v464
        %v466 = vpop.f32.mrb[0].mxu0
        %467 = vmatprep.mubr.f32.mxu0 0.0
        %468 = vmatmul.mubr.f32.gmra.mrb[0].mxu0 %v278
        %v469 = vpop.f32.mrb[0].mxu0
        %v470 = vadd.f32 0.0, %v469
        %v471 = vpop.f32.mrb[0].mxu0
        %472 = vmatprep.mubr.f32.mxu0 0.0
        %473 = vmatmul.mubr.f32.gmra.mrb[0].mxu0 %v281
        %v474 = vpop.f32.mrb[0].mxu0
        %v475 = vadd.f32 0.0, %v474
        %v476 = vpop.f32.mrb[0].mxu0
        %477 = vmatprep.mubr.f32.mxu0 0.0
        %478 = vmatmul.mubr.f32.gmra.mrb[0].mxu0 %v284
        %v479 = vpop.f32.mrb[0].mxu0
        %v480 = vadd.f32 0.0, %v479
        %v481 = vpop.f32.mrb[0].mxu0
        %482 = vmatprep.mubr.f32.mxu0 0.0
        %483 = vmatmul.mubr.f32.gmra.mrb[0].mxu0 %v287
        %v484 = vpop.f32.mrb[0].mxu0
        %v485 = vadd.f32 0.0, %v484
        %v486 = vpop.f32.mrb[0].mxu0
        %487 = vmatprep.mubr.f32.mxu0 0.0
        %488 = vmatmul.mubr.f32.gmra.mrb[0].mxu0 %v290
        %v489 = vpop.f32.mrb[0].mxu0
        %v490 = vadd.f32 0.0, %v489
        %v491 = vpop.f32.mrb[0].mxu0
        %492 = vmatprep.mubr.f32.mxu0 0.0
        %493 = vmatmul.mubr.f32.gmra.mrb[0].mxu0 %v293
        %v494 = vpop.f32.mrb[0].mxu0
        %v495 = vadd.f32 0.0, %v494
        %v496 = vpop.f32.mrb[0].mxu0
        %497 = vmatprep.mubr.f32.mxu0 0.0
        %498 = vmatmul.mubr.f32.gmra.mrb[0].mxu0 %v296
        %v499 = vpop.f32.mrb[0].mxu0
        %v500 = vadd.f32 0.0, %v499
        %v501 = vpop.f32.mrb[0].mxu0
        %502 = vmatprep.mubr.f32.mxu0 0.0
        %503 = vmatmul.mubr.f32.gmra.mrb[0].mxu0 %v299
        %v504 = vpop.f32.mrb[0].mxu0
        %v505 = vadd.f32 0.0, %v504
        %v506 = vpop.f32.mrb[0].mxu0
        %507 = vmatprep.mubr.f32.mxu0 0.0
        %508 = vmatmul.mubr.f32.gmra.mrb[0].mxu0 %v302
        %v509 = vpop.f32.mrb[0].mxu0
        %v510 = vadd.f32 0.0, %v509
        %v511 = vpop.f32.mrb[0].mxu0
        %512 = vmatprep.mubr.f32.mxu0 0.0
        %513 = vmatmul.mubr.f32.gmra.mrb[0].mxu0 %v305
        %v514 = vpop.f32.mrb[0].mxu0
        %v515 = vadd.f32 0.0, %v514
        %v516 = vpop.f32.mrb[0].mxu0
        %517 = vmatprep.mubr.f32.mxu0 0.0
        %518 = vmatmul.mubr.f32.gmra.mrb[0].mxu0 %v308
        %v519 = vpop.f32.mrb[0].mxu0
        %v520 = vadd.f32 0.0, %v519
        %v521 = vpop.f32.mrb[0].mxu0
        %522 = vmatprep.mubr.f32.mxu0 0.0
        %523 = vmatmul.mubr.f32.gmra.mrb[0].mxu0 %v311
        %v524 = vpop.f32.mrb[0].mxu0
        %v525 = vadd.f32 0.0, %v524
        %v526 = vpop.f32.mrb[0].mxu0
        %527 = vmatprep.mubr.f32.mxu0 0.0
        %528 = vmatmul.mubr.f32.gmra.mrb[0].mxu0 %v314
        %v529 = vpop.f32.mrb[0].mxu0
        %v530 = vadd.f32 0.0, %v529
        %v531 = vpop.f32.mrb[0].mxu0
        %532 = vmatprep.mubr.f32.mxu0 0.0
        %533 = vmatmul.mubr.f32.gmra.mrb[0].mxu0 %v317
        %v534 = vpop.f32.mrb[0].mxu0
        %v535 = vadd.f32 0.0, %v534
        %v536 = vpop.f32.mrb[0].mxu0
        %537 = vmatprep.mubr.f32.mxu0 0.0
        %538 = vmatmul.mubr.f32.gmra.mrb[0].mxu0 %v320
        %v539 = vpop.f32.mrb[0].mxu0
        %v540 = vadd.f32 0.0, %v539
        %v541 = vpop.f32.mrb[0].mxu0
        %542 = vmatprep.mubr.f32.mxu0 0.0
        %543 = vmatmul.mubr.f32.gmra.mrb[0].mxu0 %v323
        %v544 = vpop.f32.mrb[0].mxu0
        %v545 = vadd.f32 0.0, %v544
        %v546 = vpop.f32.mrb[0].mxu0
        %547 = vmatprep.mubr.f32.mxu0 0.0
        %548 = vmatmul.mubr.f32.gmra.mrb[0].mxu0 %v326
        %v549 = vpop.f32.mrb[0].mxu0
        %v550 = vadd.f32 0.0, %v549
        %v551 = vpop.f32.mrb[0].mxu0
        %552 = vmatprep.mubr.f32.mxu0 0.0
        %553 = vmatmul.mubr.f32.gmra.mrb[0].mxu0 %v329
        %v554 = vpop.f32.mrb[0].mxu0
        %v555 = vadd.f32 0.0, %v554
        %v556 = vpop.f32.mrb[0].mxu0
        %557 = vmatprep.mubr.f32.mxu0 0.0
        %558 = vmatmul.mubr.f32.gmra.mrb[0].mxu0 %v332
        %v559 = vpop.f32.mrb[0].mxu0
        %v560 = vadd.f32 0.0, %v559
        %v561 = vpop.f32.mrb[0].mxu0
        %562 = vdwg.mxu0
        %v563 = vmax.f32 %v405, %v445
        %v564 = vmax.f32 %v410, %v450
        %v565 = vmax.f32 %v415, %v455
        %v566 = vmax.f32 %v420, %v460
        %v567 = vmax.f32 %v425, %v465
        %v568 = vmax.f32 %v430, %v470
        %v569 = vmax.f32 %v435, %v475
        %v570 = vmax.f32 %v440, %v480
        %v571 = vmax.f32 %v485, %v525
        %v572 = vmax.f32 %v490, %v530
        %v573 = vmax.f32 %v495, %v535
        %v574 = vmax.f32 %v500, %v540
        %v575 = vmax.f32 %v505, %v545
        %v576 = vmax.f32 %v510, %v550
        %v577 = vmax.f32 %v515, %v555
        %v578 = vmax.f32 %v520, %v560
        %v579 = vmax.f32 %v563, %v571
        %v580 = vmax.f32 %v564, %v572
        %v581 = vmax.f32 %v565, %v573
        %v582 = vmax.f32 %v566, %v574
        %v583 = vmax.f32 %v567, %v575
        %v584 = vmax.f32 %v568, %v576
        %v585 = vmax.f32 %v569, %v577
        %v586 = vmax.f32 %v570, %v578
        %v587 = vld [vmem:[%s2] sm:$0x1]
        %v589 = vlaneseq
        %v590 = vshrl.u32 %v589, 7
        %v591 = vsub.s32 0, %v590
        %v592 = vrot.slane %v587, %v591
        %v594 = vadd.f32 %v579, %v592
        %v595 = vadd.f32 %v580, %v592
        %v596 = vadd.f32 %v581, %v592
        %v597 = vadd.f32 %v582, %v592
        %v598 = vadd.f32 %v583, %v592
        %v599 = vadd.f32 %v584, %v592
        %v600 = vadd.f32 %v585, %v592
        %v601 = vadd.f32 %v586, %v592
        %v602 = vtanh.pop %v594
        %v603 = vtanh.pop %v595
        %v604 = vtanh.pop %v596
        %v605 = vtanh.pop %v597
        %v606 = vtanh.pop %v598
        %v607 = vtanh.pop %v599
        %v608 = vtanh.pop %v600
        %v609 = vtanh.pop %v601
        %610 = vst [vmem:[%s188] sm:$0xff] %v602
        %611 = vst [vmem:[%s188 + $0x8] sm:$0xff] %v603
        %612 = vst [vmem:[%s188 + $0x10] sm:$0xff] %v604
        %613 = vst [vmem:[%s188 + $0x18] sm:$0xff] %v605
        %614 = vst [vmem:[%s188 + $0x20] sm:$0xff] %v606
        %615 = vst [vmem:[%s188 + $0x28] sm:$0xff] %v607
        %616 = vst [vmem:[%s188 + $0x30] sm:$0xff] %v608
        %617 = vst [vmem:[%s188 + $0x38] sm:$0xff] %v609
        %s618 = sand.u32 %s109, 1
        %s619 = scalar_lea.sflag [#allocation3], %s618
        %s620 = sand.u32 %s109, 1
        %s621 = smul.addr %s620, 64
        %s622 = scalar_lea.vmem [#allocation2], %s621
        // Predicated region
        $region33: #{tpu_custom_call.1} parent=31 // pred_check
          %p623 = pneg %p119
        $region34: #{tpu_custom_call.1} parent=31 // pred_check_branch
          %625 = sbr.rel (%p623) target = $region36
        $region35: #{tpu_custom_call.1} parent=31 // pred_region
          %s626 = smul.u32 8, %s22
          %s628 = ssub.s32 1024, 1024
          %629 = vsyncadd %s619, %s628
          %s630 = smul.addr %s21, 8
          %s631 = sadd.s32 %s626, %s630
          %s632 = smul.addr %s631, 128
          %s633 = scalar_lea.hbm %s3, %s632
          %s634 = sshll.u32 %s622, 4
          %s635 = int_to_ptr.vmem [resolvable:$true] %s634
          %640 = dma.vmem_to_hbm [thread:$0]  %s635, 1024, %s633, %s619, 128, 128, 8
        $region36: #{tpu_custom_call.1} parent=31 // pred_fallthru
          _
      $region32: #{tpu_custom_call.1} parent=5 // pred_fallthru
        _
      %p641 = scmp.le.s32.totalorder 2, %s12
      // Predicated region
      $region37: #{tpu_custom_call.1} parent=5 // pred_check
        %p642 = pneg %p641
      $region38: #{tpu_custom_call.1} parent=5 // pred_check_branch
        %644 = sbr.rel (%p642) target = $region40
      $region39: #{tpu_custom_call.1} parent=5 // pred_region
        %s645 = ssub.s32 %s12, 2
        // Predicated region
        $region41: #{tpu_custom_call.1} parent=39 // pred_check
          %p646 = pneg %p125
        $region42: #{tpu_custom_call.1} parent=39 // pred_check_branch
          %648 = sbr.rel (%p646) target = $region44
        $region43: #{tpu_custom_call.1} parent=39 // pred_region
          %s649 = sand.u32 %s110, 1
          %s650 = scalar_lea.sflag [#allocation3], %s649
          %s651 = sand.u32 %s110, 1
          %s652 = smul.addr %s651, 64
          %s653 = scalar_lea.vmem [#allocation2], %s652
          %654 = dma.done %s650, 1024
        $region44: #{tpu_custom_call.1} parent=39 // pred_fallthru
          _
      $region40: #{tpu_custom_call.1} parent=5 // pred_fallthru
        _
    $region6: #{tpu_custom_call.1} parent=1 // loop_footer
      %s16 = sadd.s32 1, %s12
    $region7: #{tpu_custom_call.1} parent=1 // loop_footer_branch
      %11 = sbr.rel target = $region3
    $region8: #{tpu_custom_call.1} parent=1 // loop_exit
      _
    %655 = vsyncpa [#allocation3], 1
    %s656 = scalar_lea.sflag [#allocation3], 1
    %657 = vsyncpa %s656, 1

</llo_original>
